<compile_context>
chip_gen: v5e
topology: v5e:2x2
jax: 0.10.0
libtpu: 0.0.40
codegen_flags: <defaults>
</compile_context>

<pallas_src>
import functools

import jax
import jax.numpy as jnp
from jax.experimental import pallas as pl
from jax.experimental.pallas import tpu as pltpu

_VMEM_LIMIT = 32 * 1024 * 1024


# --------------------------------------------------------------------------------------
# Fused matmul + bias (+ReLU6) kernel  (stem conv via im2col, head 1x1 conv)
# --------------------------------------------------------------------------------------

def _matmul_bias_act_kernel(x_ref, w_ref, b_ref, o_ref, *, relu6):
    acc = jnp.dot(x_ref[...], w_ref[...], preferred_element_type=jnp.float32)
    acc = acc + b_ref[...]                                  # (1, tn) f32 broadcast
    if relu6:
        acc = jnp.clip(acc, 0.0, 6.0)
    o_ref[...] = acc.astype(o_ref.dtype)


def matmul_bias_act(x, w, b, *, relu6, out_dtype=jnp.bfloat16, tm=256, tn=640):
    """x:(M,K) bf16, w:(K,N) bf16, b:(N,) f32 -> (M,N).  2-D (M,N)-tile grid so even
    tiny-M layers (head: M=2) expose >=2 parallel steps for v7x's two TensorCores and
    the weight streams in (K,tn) chunks.  Every layer here divides (tm,tn) exactly;
    partial blocks would still be correct (masked stores) — do not read OOB rows back."""
    M, K = x.shape
    N = w.shape[1]
    tm, tn = min(tm, M), min(tn, N)
    grid = (pl.cdiv(M, tm), pl.cdiv(N, tn))
    return pl.pallas_call(
        functools.partial(_matmul_bias_act_kernel, relu6=relu6),
        out_shape=jax.ShapeDtypeStruct((M, N), out_dtype),
        grid_spec=pltpu.PrefetchScalarGridSpec(
            num_scalar_prefetch=0,
            grid=grid,
            in_specs=[pl.BlockSpec((tm, K), lambda i, j: (i, 0)),
                      pl.BlockSpec((K, tn), lambda i, j: (0, j)),
                      pl.BlockSpec((1, tn), lambda i, j: (0, j))],
            out_specs=pl.BlockSpec((tm, tn), lambda i, j: (i, j)),
        ),
        compiler_params=pltpu.CompilerParams(
            dimension_semantics=("parallel", "parallel"),
            vmem_limit_bytes=_VMEM_LIMIT),
    )(x, w, b.reshape(1, N).astype(jnp.float32))


# --------------------------------------------------------------------------------------
# Fused inverted-residual block kernel:  expand 1x1 -> depthwise 3x3 -> project 1x1 (+res)
# --------------------------------------------------------------------------------------

def _make_block_kernel(*, H, W, C, stride, has_expand, use_res):
    """One batch element per grid step.  p_ref holds the expanded activation zero-padded
    (the halo replaces the old wrapper-side jnp.pad); for stride 2 its W parity is folded
    into lanes so every depthwise tap is a contiguous 128-aligned stride-1 slice.
    d_ref holds the depthwise output in MXU-ready (rows, C) layout for the projection."""
    Wo2 = W // 2

    def kernel(*refs):
        if has_expand:
            (x_ref, ew_ref, eb_ref, dw_ref, db_ref,
             pw_ref, pb_ref, o_ref, p_ref, d_ref) = refs
        else:
            (x_ref, dw_ref, db_ref, pw_ref, pb_ref, o_ref, p_ref, d_ref) = refs

        x = x_ref[0]                                        # (rows_in, lanes_in) bf16

        # ---- expand 1x1 (+folded BN) + ReLU6, f32 result --------------------------
        if has_expand:
            e = jnp.dot(x, ew_ref[...], preferred_element_type=jnp.float32)
            e = jnp.clip(e + eb_ref[...], 0.0, 6.0)
        else:
            e = x.astype(jnp.float32)

        # ---- place the activation into the zero-padded VMEM halo scratch ----------
        p_ref[...] = jnp.zeros(p_ref.shape, p_ref.dtype)    # halo = conv zero padding
        if stride == 1:
            for h in range(H):
                p_ref[h + 1, 1:W + 1, :] = e[h * W:(h + 1) * W, :]
        else:
            # W parity already folded into lanes by the block-diagonal expand weight:
            # e[., 0:C] = even-w columns, e[., C:2C] = odd-w columns.  The left pad of 1
            # flips the parity slot (padded col w+1 = 2*j' + q').
            for h in range(H):
                row = e[h * Wo2:(h + 1) * Wo2, :]
                p_ref[h + 1, 0:Wo2, C:2 * C] = row[:, 0:C]
                p_ref[h + 1, 1:Wo2 + 1, 0:C] = row[:, C:2 * C]

        # ---- depthwise 3x3 + ReLU6 (f32 VPU math; weights hoisted out of the loop) --
        wk = [[dw_ref[kh, kw, :] for kw in range(3)] for kh in range(3)]
        db = db_ref[0]
        if stride == 1:
            acc = None
            for kh in range(3):
                for kw in range(3):
                    t = p_ref[kh:kh + H, kw:kw + W, :] * wk[kh][kw]
                    acc = t if acc is None else acc + t
            dw = jnp.clip(acc + db, 0.0, 6.0).astype(d_ref.dtype)      # (H, W, C)
            for h in range(H):
                d_ref[h * W:(h + 1) * W, :] = dw[h]
        else:
            Ho, Wo = H // 2, W // 2
            for oh in range(Ho):
                acc = None
                for kh in range(3):
                    for kw in range(3):
                        a, q = kw // 2, kw % 2
                        t = p_ref[2 * oh + kh, a:a + Wo, q * C:(q + 1) * C] * wk[kh][kw]
                        acc = t if acc is None else acc + t
                row = jnp.clip(acc + db, 0.0, 6.0).astype(d_ref.dtype)
                d_ref[oh * Wo:(oh + 1) * Wo, :] = row

        # ---- project 1x1 (+folded BN) [+ fused residual] ---------------------------
        y = jnp.dot(d_ref[...], pw_ref[...], preferred_element_type=jnp.float32)
        y = y + pb_ref[...]
        if use_res:
            y = y + x.astype(jnp.float32)                   # cin == cout for use_res
        o_ref[0] = y.astype(o_ref.dtype)

    return kernel


def fused_inverted_residual(x, blk):
    """One pallas_call per inverted-residual block; grid over the batch dim."""
    N, H, W, Cin = x.shape
    stride = blk["stride"]
    C = blk["dw_b"].shape[0]                                # padded hidden channels
    Cout = blk["proj_b"].shape[0]
    has_expand, use_res = blk["expand"], blk["use_res"]

    if stride == 1:
        Ho, Wo = H, W
        rows_in, lanes_in = H * W, Cin
        p_shape = (H + 2, W + 2, C)
        exp_keys = ("exp_w", "exp_b")
    else:
        assert has_expand and (not use_res) and H % 2 == 0 and W % 2 == 0
        Ho, Wo = H // 2, W // 2
        rows_in, lanes_in = H * (W // 2), 2 * Cin           # free W-pair fold into lanes
        p_shape = (H + 2, W // 2 + 1, 2 * C)
        exp_keys = ("exp_wf", "exp_bf")                     # block-diagonal folded weights
    rows_out = Ho * Wo
    x_in = x.reshape(N, rows_in, lanes_in)                  # metadata-only reshape

    kern = _make_block_kernel(H=H, W=W, C=C, stride=stride,
                              has_expand=has_expand, use_res=use_res)

    args = [x_in]
    in_specs = [pl.BlockSpec((1, rows_in, lanes_in), lambda n: (n, 0, 0))]
    if has_expand:
        ew, eb = blk[exp_keys[0]], blk[exp_keys[1]]
        args += [ew, eb.reshape(1, eb.shape[0])]
        in_specs += [pl.BlockSpec(ew.shape, lambda n: (0, 0)),
                     pl.BlockSpec((1, eb.shape[0]), lambda n: (0, 0))]
    args += [blk["dw_w"], blk["dw_b"].reshape(1, C),
             blk["proj_w"], blk["proj_b"].reshape(1, Cout)]
    in_specs += [pl.BlockSpec((3, 3, C), lambda n: (0, 0, 0)),
                 pl.BlockSpec((1, C), lambda n: (0, 0)),
                 pl.BlockSpec(blk["proj_w"].shape, lambda n: (0, 0)),
                 pl.BlockSpec((1, Cout), lambda n: (0, 0))]

    y = pl.pallas_call(
        kern,
        out_shape=jax.ShapeDtypeStruct((N, rows_out, Cout), jnp.bfloat16),
        grid_spec=pltpu.PrefetchScalarGridSpec(
            num_scalar_prefetch=0,
            grid=(N,),
            in_specs=in_specs,
            out_specs=pl.BlockSpec((1, rows_out, Cout), lambda n: (n, 0, 0)),
            scratch_shapes=[pltpu.VMEM(p_shape, jnp.float32),          # padded activation
                            pltpu.VMEM((rows_out, C), jnp.bfloat16)],  # depthwise output
        ),
        compiler_params=pltpu.CompilerParams(
            dimension_semantics=("parallel",),              # batch across TCs on v7x
            vmem_limit_bytes=_VMEM_LIMIT),
    )(*args)
    return y.reshape(N, Ho, Wo, Cout)


# --------------------------------------------------------------------------------------
# Fused global-average-pool + Linear (classifier); grid over batch
# --------------------------------------------------------------------------------------

def _gap_fc_kernel(x_ref, w_ref, b_ref, o_ref):
    _, H, W, C = x_ref.shape
    pooled = jnp.sum(x_ref[...].astype(jnp.float32), axis=(1, 2)) * (1.0 / float(H * W))
    y = jnp.dot(pooled, w_ref[...], preferred_element_type=jnp.float32)   # f32: keep logit precision
    o_ref[...] = (y + b_ref[...]).astype(o_ref.dtype)


def gap_linear(x, w, b):
    """(N, H, W, C) bf16 -> (N, Nout_padded) f32 (lane-dense; slice real logits outside)."""
    N, H, W, C = x.shape
    Nout = w.shape[1]
    return pl.pallas_call(
        _gap_fc_kernel,
        out_shape=jax.ShapeDtypeStruct((N, Nout), jnp.float32),
        grid_spec=pltpu.PrefetchScalarGridSpec(
            num_scalar_prefetch=0,
            grid=(N,),
            in_specs=[pl.BlockSpec((1, H, W, C), lambda n: (n, 0, 0, 0)),
                      pl.BlockSpec((C, Nout), lambda n: (0, 0)),
                      pl.BlockSpec((1, Nout), lambda n: (0, 0))],
            out_specs=pl.BlockSpec((1, Nout), lambda n: (n, 0)),
        ),
        compiler_params=pltpu.CompilerParams(dimension_semantics=("parallel",)),
    )(x, w, b.reshape(1, Nout).astype(jnp.float32))


# --------------------------------------------------------------------------------------
# Layer wrappers (glue is metadata-only reshapes; all compute lives in the kernels)
# --------------------------------------------------------------------------------------

def pointwise_conv(x, w, b, *, relu6):
    N, H, W, C = x.shape
    Cout = w.shape[1]
    y = matmul_bias_act(x.reshape(N * H * W, C), w, b, relu6=relu6)
    return y.reshape(N, H, W, Cout)


def conv3x3_s2_relu6(x, w_mat, b):
    """Stem 3x3 stride-2 conv: im2col in XLA (tiny at 32x32) + fused Pallas matmul/ReLU6.
    TODO(synk): fold the im2col into a Pallas kernel (same parity-fold trick) for
    production 224x224 inputs, where the lane-sparse patch tensor costs an HBM pass."""
    N, H, W, C = x.shape
    Ho = (H + 2 - 3) // 2 + 1
    Wo = (W + 2 - 3) // 2 + 1
    xp = jnp.pad(x, ((0, 0), (1, 1), (1, 1), (0, 0)))
    cols = [xp[:, kh:kh + 2 * Ho - 1:2, kw:kw + 2 * Wo - 1:2, :]
            for kh in range(3) for kw in range(3)]
    patches = jnp.concatenate(cols, axis=-1)                # (N, Ho, Wo, 9*C)
    y = matmul_bias_act(patches.reshape(N * Ho * Wo, 9 * C), w_mat, b, relu6=True)
    return y.reshape(N, Ho, Wo, w_mat.shape[1])


def mobilenet_v2_forward(params, x_nchw, out_features=1):
    # NCHW -> NHWC bf16 at the boundary; bf16 MXU operands, f32 accumulation in-kernel.
    x = jnp.transpose(x_nchw, (0, 2, 3, 1)).astype(jnp.bfloat16)
    x = conv3x3_s2_relu6(x, params["stem_w"], params["stem_b"])
    for blk in params["blocks"]:
        x = fused_inverted_residual(x, blk)
    x = pointwise_conv(x, params["head_w"], params["head_b"], relu6=True)
    # classifier Dropout(0.2) is identity at inference.
    y = gap_linear(x, params["fc_w"], params["fc_b"])
    # TODO(synk): cross-pallas_call weight prefetch (semaphore futures) would also hide
    # each layer's first-step weight DMA; omitted to keep the kernels self-contained.
    return y[:, :out_features]


# --------------------------------------------------------------------------------------
# Deterministic synthetic parameters (BN folded; channels zero-padded to multiples of 128,
# padded channels carry exact zeros through the whole network so the math is unchanged).
# --------------------------------------------------------------------------------------

_SETTINGS = [(1, 16, 1, 1), (6, 24, 2, 2), (6, 32, 3, 2), (6, 64, 4, 2),
             (6, 96, 3, 1), (6, 160, 3, 2), (6, 320, 1, 1)]


def _pad128(n):
    return ((n + 127) // 128) * 128


def init_params(key, out_features=1):
    keys = iter(jax.random.split(key, 512))

    def dense32(cin, cout, cin_p, cout_p):
        w = jnp.zeros((cin_p, cout_p), jnp.float32)
        w = w.at[:cin, :cout].set(
            jax.random.normal(next(keys), (cin, cout), jnp.float32) / jnp.sqrt(float(cin)))
        b = jnp.zeros((cout_p,), jnp.float32)
        b = b.at[:cout].set(jax.random.normal(next(keys), (cout,), jnp.float32) * 0.01)
        return w, b

    def dwise(c, c_p):
        w = jnp.zeros((3, 3, c_p), jnp.float32)
        w = w.at[:, :, :c].set(jax.random.normal(next(keys), (3, 3, c), jnp.float32) / 3.0)
        b = jnp.zeros((c_p,), jnp.float32)
        b = b.at[:c].set(jax.random.normal(next(keys), (c,), jnp.float32) * 0.01)
        return w, b                                   # depthwise stays f32 (v5e-safe VPU math)

    params = {}
    w, b = dense32(27, 32, 27, _pad128(32))           # im2col'd 3x3x3 stem
    params["stem_w"], params["stem_b"] = w.astype(jnp.bfloat16), b

    blocks = []
    cin, cin_p = 32, _pad128(32)
    for t, c, n, s in _SETTINGS:
        c_p = _pad128(c)
        for i in range(n):
            stride = s if i == 0 else 1
            hidden, hidden_p = cin * t, _pad128(cin * t)
            blk = {"stride": stride, "expand": t != 1,
                   "use_res": (stride == 1 and cin == c)}
            if t != 1:
                w32, b32 = dense32(cin, hidden, cin_p, hidden_p)
                if stride == 2:
                    # W-parity block-diagonal fold: lanes [even_in | odd_in] -> [even_out | odd_out]
                    wf = jnp.zeros((2 * cin_p, 2 * hidden_p), jnp.float32)
                    wf = wf.at[:cin_p, :hidden_p].set(w32)
                    wf = wf.at[cin_p:, hidden_p:].set(w32)
                    blk["exp_wf"] = wf.astype(jnp.bfloat16)
                    blk["exp_bf"] = jnp.concatenate([b32, b32])
                else:
                    blk["exp_w"], blk["exp_b"] = w32.astype(jnp.bfloat16), b32
            blk["dw_w"], blk["dw_b"] = dwise(hidden, hidden_p)
            w32, b32 = dense32(hidden, c, hidden_p, c_p)
            blk["proj_w"], blk["proj_b"] = w32.astype(jnp.bfloat16), b32
            blocks.append(blk)
            cin, cin_p = c, c_p
    params["blocks"] = blocks

    w32, b32 = dense32(cin, 1280, cin_p, 1280)
    params["head_w"], params["head_b"] = w32.astype(jnp.bfloat16), b32
    # classifier Linear: out_features lane-padded to 128 (sliced in the wrapper), kept f32.
    params["fc_w"], params["fc_b"] = dense32(1280, out_features, 1280, 128)
    return params


# --------------------------------------------------------------------------------------

if __name__ == "__main__":
    key = jax.random.PRNGKey(0)
    pkey, xkey = jax.random.split(key)
    params = init_params(pkey, out_features=1)

    # Small NCHW input consistent with the module (3-channel image, 32x32 -> 1x1 features).
    x = jax.random.normal(xkey, (2, 3, 32, 32), jnp.float32)

    out = mobilenet_v2_forward(params, x, out_features=1)
    out = jax.block_until_ready(out)
    assert out.shape == (2, 1) and out.dtype == jnp.float32
    print("KERNEL_OK")
</pallas_src>

<mosaic_0001>
module attributes {stable_mosaic.version = 11 : i64} {
  func.func @_matmul_bias_act_kernel(%arg0: i32, %arg1: i32, %arg2: memref<256x27xbf16, #tpu.memory_space<vmem>>, %arg3: memref<27x128xbf16, #tpu.memory_space<vmem>>, %arg4: memref<1x128xf32, #tpu.memory_space<vmem>>, %arg5: memref<256x128xbf16, #tpu.memory_space<vmem>>) attributes {dimension_semantics = [#tpu.dimension_semantics<parallel>, #tpu.dimension_semantics<parallel>], iteration_bounds = array<i64: 2, 1>, scalar_prefetch = 0 : i64, scratch_operands = 0 : i64, tpu.core_type = #tpu.core_type<tc>, window_params = [{transform_indices = @transform_0, window_bounds = array<i64: 256, 27>}, {transform_indices = @transform_1, window_bounds = array<i64: 27, 128>}, {transform_indices = @transform_2, window_bounds = array<i64: 1, 128>}, {transform_indices = @transform_3, window_bounds = array<i64: 256, 128>}]} {
    %c0 = arith.constant 0 : index
    %c0_0 = arith.constant 0 : index
    %0 = vector.load %arg2[%c0, %c0_0] : memref<256x27xbf16, #tpu.memory_space<vmem>>, vector<256x27xbf16>
    %c0_1 = arith.constant 0 : index
    %c0_2 = arith.constant 0 : index
    %1 = vector.load %arg3[%c0_1, %c0_2] : memref<27x128xbf16, #tpu.memory_space<vmem>>, vector<27x128xbf16>
    %cst = arith.constant dense<0.000000e+00> : vector<256x128xf32>
    %2 = tpu.matmul %0, %1, %cst {dimension_numbers = #tpu.dot_dimension_numbers<[1], [0], [0], [1], [0, 0, 1, 1], [], []>} : vector<256x27xbf16>, vector<27x128xbf16>, vector<256x128xf32> -> vector<256x128xf32>
    %c0_3 = arith.constant 0 : index
    %c0_4 = arith.constant 0 : index
    %3 = vector.load %arg4[%c0_3, %c0_4] : memref<1x128xf32, #tpu.memory_space<vmem>>, vector<1x128xf32>
    %4 = vector.broadcast %3 : vector<1x128xf32> to vector<256x128xf32>
    %5 = arith.addf %2, %4 : vector<256x128xf32>
    %cst_5 = arith.constant 0.000000e+00 : f32
    %cst_6 = arith.constant 6.000000e+00 : f32
    %6 = vector.broadcast %cst_5 : f32 to vector<256x128xf32>
    %7 = arith.maximumf %6, %5 : vector<256x128xf32>
    %8 = vector.broadcast %cst_6 : f32 to vector<256x128xf32>
    %9 = arith.minimumf %8, %7 : vector<256x128xf32>
    %10 = arith.truncf %9 : vector<256x128xf32> to vector<256x128xbf16>
    %c0_7 = arith.constant 0 : index
    %c0_8 = arith.constant 0 : index
    %11 = vector.load %arg5[%c0_7, %c0_8] : memref<256x128xbf16, #tpu.memory_space<vmem>>, vector<256x128xbf16>
    tpu.vector_store %arg5[%c0_7, %c0_8], %10 {strides = array<i32>} : memref<256x128xbf16, #tpu.memory_space<vmem>>, vector<256x128xbf16>,
    return
  }
  func.func @transform_0(%arg0: i32, %arg1: i32) -> (i32, i32) {
    %c0_i32 = arith.constant 0 : i32
    %c0_i32_0 = arith.constant 0 : i32
    return %arg0, %c0_i32 : i32, i32
  }
  func.func @transform_1(%arg0: i32, %arg1: i32) -> (i32, i32) {
    %c0_i32 = arith.constant 0 : i32
    %c0_i32_0 = arith.constant 0 : i32
    return %c0_i32, %arg1 : i32, i32
  }
  func.func @transform_2(%arg0: i32, %arg1: i32) -> (i32, i32) {
    %c0_i32 = arith.constant 0 : i32
    %c0_i32_0 = arith.constant 0 : i32
    return %c0_i32, %arg1 : i32, i32
  }
  func.func @transform_3(%arg0: i32, %arg1: i32) -> (i32, i32) {
    %c0_i32 = arith.constant 0 : i32
    return %arg0, %arg1 : i32, i32
  }
}

</mosaic_0001>

<llo_original>
// kernel: tpu_custom_call.1
$region0: #{tpu_custom_call.1}
  #allocation0 [shape = 'u32[]', space=smem, size = 0x4, offset = 0x4, fixed_abs, tag = 'smem constant byte address 0x4 - core index']
  #allocation1 [shape = 'u32[72,128]{1,0:T(1,128)}', space=vmem, size = 0x9000, scoped, tag = 'internal scratch']
  %s0 = inlined_call_operand.vmem [shape: bf16[512,27], index: 0, kind: input, shape index: {}]
  %s1 = inlined_call_operand.vmem [shape: bf16[27,128], index: 1, kind: input, shape index: {}]
  %s2 = inlined_call_operand.vmem [shape: f32[1,128], index: 2, kind: input, shape index: {}]
  %s3 = inlined_call_operand.hbm [shape: bf16[512,128], index: 3, kind: output, shape index: {}]
  %s4 = sld [smem:[#allocation0]]
  $region45: #{tpu_custom_call.1} parent=0
    _
  %s6 = ssub.s32 1, %s4
  %s7 = scalar_select 0, %s6, %s4
  $region1: #{tpu_custom_call.1} parent=0
    #allocation2 [shape = 'u8[131072]{0}', space=vmem, size = 0x20000, scoped, tag = 'output window, operand 0']
    #allocation3 [shape = 's32[2]{0}', space=sflag, size = 0x8, scoped, tag = 'scoped memory for tpu_custom_call.1']
    %8 = vsyncpa [#allocation3], 0
    %s9 = scalar_lea.sflag [#allocation3], 1
    %10 = vsyncpa %s9, 0
    loop: start=0, step=1, limit=4
    $region2: #{tpu_custom_call.1} parent=1 // loop_pre_header
      _
    $region3: #{tpu_custom_call.1} parent=1 // loop_header
      %s12 = sphi 0, %s16
      %p13 = scmp.ge.s32.totalorder %s12, 4
      %s19 = sphi 0, %s31
      %s20 = sphi 0, %s27
      %s21 = sphi 0, %s19
      %s22 = sphi 0, %s20
      %s23 = sphi 0, %s21
      %s24 = sphi 0, %s22
      %s34 = sphi 0, %s36
      %s37 = sphi 0, %s34
      %s38 = sphi 0, %s37
      %s54 = sphi 0, %s38
      %s60 = sphi 0, %s62
      %s63 = sphi 0, %s60
      %s64 = sphi 0, %s63
      %s80 = sphi 0, %s64
      %s86 = sphi 0, %s88
      %s89 = sphi 0, %s86
      %s90 = sphi 0, %s89
      %s106 = sphi 0, %s90
      %s114 = sphi 0, %s116
      %s117 = sphi 0, %s114
      %s118 = sphi 0, %s117
      %s134 = sphi 0, %s118
    $region4: #{tpu_custom_call.1} parent=1 // loop_header_branch
      %15 = sbr.rel (%p13) target = $region8
    $region5: #{tpu_custom_call.1} parent=1 // loop_body
      %s17 = ssub.s32 %s12, 1
      %s18 = ssub.s32 %s12, 2
      %s25 = sadd.s32 1, %s20
      %p26 = scmp.ge.s32.totalorder %s25, 1
      %s27 = scalar_select %p26, 0, %s25
      %s28 = sadd.s32 1, %s19
      %s29 = scalar_select %p26, %s28, %s19
      %p30 = scmp.ge.s32.totalorder %s29, 2
      %s31 = scalar_select %p30, 0, %s29
      %s32 = ssub.s32 %s19, %s31
      %p33 = scmp.eq.s32.totalorder %s32, 0
      %s35 = sadd.s32 %s34, 1
      %s36 = scalar_select %p33, %s34, %s35
      %p39 = pneg %p33
      %p40 = scmp.eq.s32.totalorder %s12, 1
      %p41 = por %p39, %p40
      %p42 = scmp.ne.s32.totalorder %s34, %s37
      %p43 = scmp.eq.s32.totalorder %s12, 0
      %p44 = por %p42, %p43
      %p45 = scmp.ne.s32.totalorder %s34, %s37
      %p46 = scmp.eq.s32.totalorder %s17, 1
      %p47 = por %p45, %p46
      %p48 = scmp.ne.s32.totalorder %s37, %s38
      %p49 = scmp.eq.s32.totalorder %s17, 0
      %p50 = por %p48, %p49
      %p51 = scmp.ne.s32.totalorder %s37, %s38
      %p52 = scmp.eq.s32.totalorder %s18, 1
      %p53 = por %p51, %p52
      %p55 = scmp.ne.s32.totalorder %s38, %s54
      %p56 = scmp.eq.s32.totalorder %s18, 0
      %p57 = por %p55, %p56
      %s58 = ssub.s32 %s20, %s27
      %p59 = scmp.eq.s32.totalorder %s58, 0
      %s61 = sadd.s32 %s60, 1
      %s62 = scalar_select %p59, %s60, %s61
      %p65 = pneg %p59
      %p66 = scmp.eq.s32.totalorder %s12, 1
      %p67 = por %p65, %p66
      %p68 = scmp.ne.s32.totalorder %s60, %s63
      %p69 = scmp.eq.s32.totalorder %s12, 0
      %p70 = por %p68, %p69
      %p71 = scmp.ne.s32.totalorder %s60, %s63
      %p72 = scmp.eq.s32.totalorder %s17, 1
      %p73 = por %p71, %p72
      %p74 = scmp.ne.s32.totalorder %s63, %s64
      %p75 = scmp.eq.s32.totalorder %s17, 0
      %p76 = por %p74, %p75
      %p77 = scmp.ne.s32.totalorder %s63, %s64
      %p78 = scmp.eq.s32.totalorder %s18, 1
      %p79 = por %p77, %p78
      %p81 = scmp.ne.s32.totalorder %s64, %s80
      %p82 = scmp.eq.s32.totalorder %s18, 0
      %p83 = por %p81, %p82
      %s84 = ssub.s32 %s20, %s27
      %p85 = scmp.eq.s32.totalorder %s84, 0
      %s87 = sadd.s32 %s86, 1
      %s88 = scalar_select %p85, %s86, %s87
      %p91 = pneg %p85
      %p92 = scmp.eq.s32.totalorder %s12, 1
      %p93 = por %p91, %p92
      %p94 = scmp.ne.s32.totalorder %s86, %s89
      %p95 = scmp.eq.s32.totalorder %s12, 0
      %p96 = por %p94, %p95
      %p97 = scmp.ne.s32.totalorder %s86, %s89
      %p98 = scmp.eq.s32.totalorder %s17, 1
      %p99 = por %p97, %p98
      %p100 = scmp.ne.s32.totalorder %s89, %s90
      %p101 = scmp.eq.s32.totalorder %s17, 0
      %p102 = por %p100, %p101
      %p103 = scmp.ne.s32.totalorder %s89, %s90
      %p104 = scmp.eq.s32.totalorder %s18, 1
      %p105 = por %p103, %p104
      %p107 = scmp.ne.s32.totalorder %s90, %s106
      %p108 = scmp.eq.s32.totalorder %s18, 0
      %p109 = por %p107, %p108
      %s110 = ssub.s32 %s19, %s31
      %s111 = ssub.s32 %s20, %s27
      %s112 = sor.u32 %s110, %s111
      %p113 = scmp.eq.s32.totalorder %s112, 0
      %s115 = sadd.s32 %s114, 1
      %s116 = scalar_select %p113, %s114, %s115
      %p119 = pneg %p113
      %p120 = scmp.eq.s32.totalorder %s12, 1
      %p121 = por %p119, %p120
      %p122 = scmp.ne.s32.totalorder %s114, %s117
      %p123 = scmp.eq.s32.totalorder %s12, 0
      %p124 = por %p122, %p123
      %p125 = scmp.ne.s32.totalorder %s114, %s117
      %p126 = scmp.eq.s32.totalorder %s17, 1
      %p127 = por %p125, %p126
      %p128 = scmp.ne.s32.totalorder %s117, %s118
      %p129 = scmp.eq.s32.totalorder %s17, 0
      %p130 = por %p128, %p129
      %p131 = scmp.ne.s32.totalorder %s117, %s118
      %p132 = scmp.eq.s32.totalorder %s18, 1
      %p133 = por %p131, %p132
      %p135 = scmp.ne.s32.totalorder %s118, %s134
      %p136 = scmp.eq.s32.totalorder %s18, 0
      %p137 = por %p135, %p136
      %p138 = scmp.le.s32.totalorder 1, %s12
      %p139 = scmp.lt.s32.totalorder %s12, 3
      %p140 = pnand %p138, %p139
      %p141 = pneg %p140
      // Predicated region
      $region9: #{tpu_custom_call.1} parent=5 // pred_check
        _
      $region10: #{tpu_custom_call.1} parent=5 // pred_check_branch
        %143 = sbr.rel (%p140) target = $region12
      $region11: #{tpu_custom_call.1} parent=5 // pred_region
        %s144 = ssub.s32 %s12, 1
        // Predicated region
        $region13: #{tpu_custom_call.1} parent=11 // pred_check
          %p145 = pneg %p76
        $region14: #{tpu_custom_call.1} parent=11 // pred_check_branch
          %147 = sbr.rel (%p145) target = $region16
        $region15: #{tpu_custom_call.1} parent=11 // pred_region
          %p148 = scmp.lt.s32.totalorder %s22, 0
          %s149 = scalar_select %p148, %s22, 0
          %s150 = smul.addr %s149, 4
          %s151 = scalar_lea.vmem %s1, %s150
        $region16: #{tpu_custom_call.1} parent=11 // pred_fallthru
          _
        // Predicated region
        $region17: #{tpu_custom_call.1} parent=11 // pred_check
          %p152 = pneg %p102
        $region18: #{tpu_custom_call.1} parent=11 // pred_check_branch
          %154 = sbr.rel (%p152) target = $region20
        $region19: #{tpu_custom_call.1} parent=11 // pred_region
          %p155 = scmp.lt.s32.totalorder %s22, 0
          %s156 = scalar_select %p155, %s22, 0
          %s157 = scalar_lea.vmem %s2, %s156
        $region20: #{tpu_custom_call.1} parent=11 // pred_fallthru
          _
      $region12: #{tpu_custom_call.1} parent=5 // pred_fallthru
        _
      %p158 = scmp.lt.s32.totalorder %s12, 2
      // Predicated region
      $region21: #{tpu_custom_call.1} parent=5 // pred_check
        %p159 = pneg %p158
      $region22: #{tpu_custom_call.1} parent=5 // pred_check_branch
        %161 = sbr.rel (%p159) target = $region24
      $region23: #{tpu_custom_call.1} parent=5 // pred_region
        // Predicated region
        $region25: #{tpu_custom_call.1} parent=23 // pred_check
          %p162 = pneg %p44
        $region26: #{tpu_custom_call.1} parent=23 // pred_check_branch
          %164 = sbr.rel (%p162) target = $region28
        $region27: #{tpu_custom_call.1} parent=23 // pred_region
          %s165 = smul.u32 32, %s19
          %p166 = scmp.lt.s32.totalorder %s165, 63
          %s167 = scalar_select %p166, %s165, 63
          %s168 = smul.addr %s167, 4
          %s169 = scalar_lea.vmem %s0, %s168
          %s170 = smul.u32 32, %s19
        $region28: #{tpu_custom_call.1} parent=23 // pred_fallthru
          _
      $region24: #{tpu_custom_call.1} parent=5 // pred_fallthru
        _
      %p171 = scmp.le.s32.totalorder 1, %s12
      %p172 = scmp.lt.s32.totalorder %s12, 3
      %p173 = pnand %p171, %p172
      %p174 = pneg %p173
      // Predicated region
      $region29: #{tpu_custom_call.1} parent=5 // pred_check
        _
      $region30: #{tpu_custom_call.1} parent=5 // pred_check_branch
        %176 = sbr.rel (%p173) target = $region32
      $region31: #{tpu_custom_call.1} parent=5 // pred_region
        %s177 = ssub.s32 %s12, 1
        %s178 = smul.u32 32, %s21
        %p179 = scmp.lt.s32.totalorder %s178, 63
        %s180 = scalar_select %p179, %s178, 63
        %s181 = smul.addr %s180, 4
        %s182 = scalar_lea.vmem %s0, %s181
        %p183 = pneg %p50
        %p184 = pneg %p47
        %p185 = scmp.lt.s32.totalorder %s22, 0
        %s186 = scalar_select %p185, %s22, 0
        %s187 = smul.addr %s186, 4
        %s188 = scalar_lea.vmem %s1, %s187
        %p189 = pneg %p76
        %p190 = pneg %p73
        %p191 = scmp.lt.s32.totalorder %s22, 0
        %s192 = scalar_select %p191, %s22, 0
        %s193 = scalar_lea.vmem %s2, %s192
        %p194 = pneg %p102
        %p195 = pneg %p99
        %p196 = pneg %p130
        %p197 = pneg %p127
        %s198 = sand.u32 %s117, 1
        %s199 = scalar_lea.sflag [#allocation3], %s198
        %s200 = sand.u32 %s117, 1
        %s201 = smul.addr %s200, 128
        %s202 = scalar_lea.vmem [#allocation2], %s201
        %s203 = smul.u32 32, %s21
        %p204 = scmp.lt.s32.totalorder %s203, 63
        %s205 = scalar_select %p204, %s203, 63
        %s206 = smul.addr %s205, 4
        %s207 = scalar_lea.vmem %s0, %s206
        %s208 = smul.u32 32, %s21
        %p209 = scmp.lt.s32.totalorder %s22, 0
        %s210 = scalar_select %p209, %s22, 0
        %s211 = smul.addr %s210, 4
        %s212 = scalar_lea.vmem %s1, %s211
        %p213 = scmp.lt.s32.totalorder %s22, 0
        %s214 = scalar_select %p213, %s22, 0
        %s215 = scalar_lea.vmem %s2, %s214
        %s216 = smul.u32 32, %s21
        %v218 = vld [vmem:[%s207] sm:$0xf]
        %v219 = vld [vmem:[%s207 + $0x4] sm:$0xf]
        %v220 = vld [vmem:[%s207 + $0x8] sm:$0xf]
        %v221 = vld [vmem:[%s207 + $0xc] sm:$0xf]
        %v222 = vld [vmem:[%s207 + $0x10] sm:$0xf]
        %v223 = vld [vmem:[%s207 + $0x14] sm:$0xf]
        %v224 = vld [vmem:[%s207 + $0x18] sm:$0xf]
        %v225 = vld [vmem:[%s207 + $0x1c] sm:$0xf]
        %v226 = vld [vmem:[%s207 + $0x20] sm:$0xf]
        %v227 = vld [vmem:[%s207 + $0x24] sm:$0xf]
        %v228 = vld [vmem:[%s207 + $0x28] sm:$0xf]
        %v229 = vld [vmem:[%s207 + $0x2c] sm:$0xf]
        %v230 = vld [vmem:[%s207 + $0x30] sm:$0xf]
        %v231 = vld [vmem:[%s207 + $0x34] sm:$0xf]
        %v232 = vld [vmem:[%s207 + $0x38] sm:$0xf]
        %v233 = vld [vmem:[%s207 + $0x3c] sm:$0xf]
        %v234 = vld [vmem:[%s207 + $0x40] sm:$0xf]
        %v235 = vld [vmem:[%s207 + $0x44] sm:$0xf]
        %v236 = vld [vmem:[%s207 + $0x48] sm:$0xf]
        %v237 = vld [vmem:[%s207 + $0x4c] sm:$0xf]
        %v238 = vld [vmem:[%s207 + $0x50] sm:$0xf]
        %v239 = vld [vmem:[%s207 + $0x54] sm:$0xf]
        %v240 = vld [vmem:[%s207 + $0x58] sm:$0xf]
        %v241 = vld [vmem:[%s207 + $0x5c] sm:$0xf]
        %v242 = vld [vmem:[%s207 + $0x60] sm:$0xf]
        %v243 = vld [vmem:[%s207 + $0x64] sm:$0xf]
        %v244 = vld [vmem:[%s207 + $0x68] sm:$0xf]
        %v245 = vld [vmem:[%s207 + $0x6c] sm:$0xf]
        %v246 = vld [vmem:[%s207 + $0x70] sm:$0xf]
        %v247 = vld [vmem:[%s207 + $0x74] sm:$0xf]
        %v248 = vld [vmem:[%s207 + $0x78] sm:$0xf]
        %v249 = vld [vmem:[%s207 + $0x7c] sm:$0xf]
        %v250 = vld [vmem:[%s212] sm:$0xf]
        %v251 = vld [vmem:[%s212 + $0x4] sm:$0xf]
        %v252 = vld [vmem:[%s212 + $0x8] sm:$0xf]
        %v253 = vld [vmem:[%s212 + $0xc] sm:$0x3]
        %v254 = vld [vmem:[%s215] sm:$0x1]
        %v256 = vperm.slane %v254, 0
        %v290 = vunpack.c.l.b16 %v218
        %v291 = vunpack.c.l.b16 %v219
        %v292 = vunpack.c.l.b16 %v220
        %v293 = vunpack.c.l.b16 %v221
        %v294 = vunpack.c.l.b16 %v222
        %v295 = vunpack.c.l.b16 %v223
        %v296 = vunpack.c.l.b16 %v224
        %v297 = vunpack.c.l.b16 %v225
        %v298 = vunpack.c.l.b16 %v226
        %v299 = vunpack.c.l.b16 %v227
        %v300 = vunpack.c.l.b16 %v228
        %v301 = vunpack.c.l.b16 %v229
        %v302 = vunpack.c.l.b16 %v230
        %v303 = vunpack.c.l.b16 %v231
        %v304 = vunpack.c.l.b16 %v232
        %v305 = vunpack.c.l.b16 %v233
        %v306 = vunpack.c.l.b16 %v234
        %v307 = vunpack.c.l.b16 %v235
        %v308 = vunpack.c.l.b16 %v236
        %v309 = vunpack.c.l.b16 %v237
        %v310 = vunpack.c.l.b16 %v238
        %v311 = vunpack.c.l.b16 %v239
        %v312 = vunpack.c.l.b16 %v240
        %v313 = vunpack.c.l.b16 %v241
        %v314 = vunpack.c.l.b16 %v242
        %v315 = vunpack.c.l.b16 %v243
        %v316 = vunpack.c.l.b16 %v244
        %v317 = vunpack.c.l.b16 %v245
        %v318 = vunpack.c.l.b16 %v246
        %v319 = vunpack.c.l.b16 %v247
        %v320 = vunpack.c.l.b16 %v248
        %v321 = vunpack.c.l.b16 %v249
        %v322 = vpack.c.b16 %v291, %v290
        %v323 = vpack.c.b16 %v293, %v292
        %v324 = vpack.c.b16 %v295, %v294
        %v325 = vpack.c.b16 %v297, %v296
        %v326 = vpack.c.b16 %v299, %v298
        %v327 = vpack.c.b16 %v301, %v300
        %v328 = vpack.c.b16 %v303, %v302
        %v329 = vpack.c.b16 %v305, %v304
        %v330 = vpack.c.b16 %v307, %v306
        %v331 = vpack.c.b16 %v309, %v308
        %v332 = vpack.c.b16 %v311, %v310
        %v333 = vpack.c.b16 %v313, %v312
        %v334 = vpack.c.b16 %v315, %v314
        %v335 = vpack.c.b16 %v317, %v316
        %v336 = vpack.c.b16 %v319, %v318
        %v337 = vpack.c.b16 %v321, %v320
        %v342 = vunpack.c.l.b16 %v250
        %v343 = vunpack.c.l.b16 %v251
        %v344 = vunpack.c.l.b16 %v252
        %v345 = vunpack.c.l.b16 %v253
        %v346 = vpack.c.b16 %v343, %v342
        %v347 = vpack.c.b16 %v345, %v344
        %vm349 = vcmask 220160
        %v351 = vsel %vm349, %v322, 0
        %v354 = vsel %vm349, %v323, 0
        %v357 = vsel %vm349, %v324, 0
        %v360 = vsel %vm349, %v325, 0
        %v363 = vsel %vm349, %v326, 0
        %v366 = vsel %vm349, %v327, 0
        %v369 = vsel %vm349, %v328, 0
        %v372 = vsel %vm349, %v329, 0
        %v375 = vsel %vm349, %v330, 0
        %v378 = vsel %vm349, %v331, 0
        %v381 = vsel %vm349, %v332, 0
        %v384 = vsel %vm349, %v333, 0
        %v387 = vsel %vm349, %v334, 0
        %v390 = vsel %vm349, %v335, 0
        %v393 = vsel %vm349, %v336, 0
        %v396 = vsel %vm349, %v337, 0
        %vm398 = vcmask 1044480
        %vm399 = vcmask 1045504
        %v400 = vsel %vm398, 4294967295, 65535
        %v401 = vsel %vm399, %v400, 0
        %v403 = vand.u32 %v347, %v401
        %405 = vmatpush.bf16.msra.mxu0 0
        %406 = vmatpush.bf16.msra.mxu0 0
        %407 = vmatpush.bf16.msra.mxu0 0
        %408 = vmatpush.bf16.msra.mxu0 0
        %409 = vmatpush.bf16.msra.mxu0 0
        %410 = vmatpush.bf16.msra.mxu0 0
        %411 = vmatpush.bf16.msra.mxu0 %v403
        %412 = vmatpush.bf16.msra.mxu0 %v346
        %413 = vmatmul.bf16.gmra.mxu0 %v351
        %v414 = vpop.f32.mrf.mxu0
        %v415 = vadd.f32 %v256, %v414
        %v416 = vpop.f32.mrf.mxu0
        %v417 = vadd.f32 %v256, %v416
        %418 = vmatmul.bf16.gmra.mxu0 %v354
        %v419 = vpop.f32.mrf.mxu0
        %v420 = vadd.f32 %v256, %v419
        %v421 = vpop.f32.mrf.mxu0
        %v422 = vadd.f32 %v256, %v421
        %423 = vmatmul.bf16.gmra.mxu0 %v357
        %v424 = vpop.f32.mrf.mxu0
        %v425 = vadd.f32 %v256, %v424
        %v426 = vpop.f32.mrf.mxu0
        %v427 = vadd.f32 %v256, %v426
        %428 = vmatmul.bf16.gmra.mxu0 %v360
        %v429 = vpop.f32.mrf.mxu0
        %v430 = vadd.f32 %v256, %v429
        %v431 = vpop.f32.mrf.mxu0
        %v432 = vadd.f32 %v256, %v431
        %433 = vmatmul.bf16.gmra.mxu0 %v363
        %v434 = vpop.f32.mrf.mxu0
        %v435 = vadd.f32 %v256, %v434
        %v436 = vpop.f32.mrf.mxu0
        %v437 = vadd.f32 %v256, %v436
        %438 = vmatmul.bf16.gmra.mxu0 %v366
        %v439 = vpop.f32.mrf.mxu0
        %v440 = vadd.f32 %v256, %v439
        %v441 = vpop.f32.mrf.mxu0
        %v442 = vadd.f32 %v256, %v441
        %443 = vmatmul.bf16.gmra.mxu0 %v369
        %v444 = vpop.f32.mrf.mxu0
        %v445 = vadd.f32 %v256, %v444
        %v446 = vpop.f32.mrf.mxu0
        %v447 = vadd.f32 %v256, %v446
        %448 = vmatmul.bf16.gmra.mxu0 %v372
        %v449 = vpop.f32.mrf.mxu0
        %v450 = vadd.f32 %v256, %v449
        %v451 = vpop.f32.mrf.mxu0
        %v452 = vadd.f32 %v256, %v451
        %453 = vmatmul.bf16.gmra.mxu0 %v375
        %v454 = vpop.f32.mrf.mxu0
        %v455 = vadd.f32 %v256, %v454
        %v456 = vpop.f32.mrf.mxu0
        %v457 = vadd.f32 %v256, %v456
        %458 = vmatmul.bf16.gmra.mxu0 %v378
        %v459 = vpop.f32.mrf.mxu0
        %v460 = vadd.f32 %v256, %v459
        %v461 = vpop.f32.mrf.mxu0
        %v462 = vadd.f32 %v256, %v461
        %463 = vmatmul.bf16.gmra.mxu0 %v381
        %v464 = vpop.f32.mrf.mxu0
        %v465 = vadd.f32 %v256, %v464
        %v466 = vpop.f32.mrf.mxu0
        %v467 = vadd.f32 %v256, %v466
        %468 = vmatmul.bf16.gmra.mxu0 %v384
        %v469 = vpop.f32.mrf.mxu0
        %v470 = vadd.f32 %v256, %v469
        %v471 = vpop.f32.mrf.mxu0
        %v472 = vadd.f32 %v256, %v471
        %473 = vmatmul.bf16.gmra.mxu0 %v387
        %v474 = vpop.f32.mrf.mxu0
        %v475 = vadd.f32 %v256, %v474
        %v476 = vpop.f32.mrf.mxu0
        %v477 = vadd.f32 %v256, %v476
        %478 = vmatmul.bf16.gmra.mxu0 %v390
        %v479 = vpop.f32.mrf.mxu0
        %v480 = vadd.f32 %v256, %v479
        %v481 = vpop.f32.mrf.mxu0
        %v482 = vadd.f32 %v256, %v481
        %483 = vmatmul.bf16.gmra.mxu0 %v393
        %v484 = vpop.f32.mrf.mxu0
        %v485 = vadd.f32 %v256, %v484
        %v486 = vpop.f32.mrf.mxu0
        %v487 = vadd.f32 %v256, %v486
        %488 = vmatmul.bf16.gmra.mxu0 %v396
        %v489 = vpop.f32.mrf.mxu0
        %v490 = vadd.f32 %v256, %v489
        %v491 = vpop.f32.mrf.mxu0
        %v492 = vadd.f32 %v256, %v491
        %493 = vdwg.mxu0
        %v494 = vmax.f32 %v415, 0.0
        %v495 = vmax.f32 %v417, 0.0
        %v496 = vmax.f32 %v420, 0.0
        %v497 = vmax.f32 %v422, 0.0
        %v498 = vmax.f32 %v425, 0.0
        %v499 = vmax.f32 %v427, 0.0
        %v500 = vmax.f32 %v430, 0.0
        %v501 = vmax.f32 %v432, 0.0
        %v502 = vmax.f32 %v435, 0.0
        %v503 = vmax.f32 %v437, 0.0
        %v504 = vmax.f32 %v440, 0.0
        %v505 = vmax.f32 %v442, 0.0
        %v506 = vmax.f32 %v445, 0.0
        %v507 = vmax.f32 %v447, 0.0
        %v508 = vmax.f32 %v450, 0.0
        %v509 = vmax.f32 %v452, 0.0
        %v510 = vmax.f32 %v455, 0.0
        %v511 = vmax.f32 %v457, 0.0
        %v512 = vmax.f32 %v460, 0.0
        %v513 = vmax.f32 %v462, 0.0
        %v514 = vmax.f32 %v465, 0.0
        %v515 = vmax.f32 %v467, 0.0
        %v516 = vmax.f32 %v470, 0.0
        %v517 = vmax.f32 %v472, 0.0
        %v518 = vmax.f32 %v475, 0.0
        %v519 = vmax.f32 %v477, 0.0
        %v520 = vmax.f32 %v480, 0.0
        %v521 = vmax.f32 %v482, 0.0
        %v522 = vmax.f32 %v485, 0.0
        %v523 = vmax.f32 %v487, 0.0
        %v524 = vmax.f32 %v490, 0.0
        %v525 = vmax.f32 %v492, 0.0
        %v526 = vmin.f32 %v494, 6.0
        %v527 = vmin.f32 %v495, 6.0
        %v528 = vmin.f32 %v496, 6.0
        %v529 = vmin.f32 %v497, 6.0
        %v530 = vmin.f32 %v498, 6.0
        %v531 = vmin.f32 %v499, 6.0
        %v532 = vmin.f32 %v500, 6.0
        %v533 = vmin.f32 %v501, 6.0
        %v534 = vmin.f32 %v502, 6.0
        %v535 = vmin.f32 %v503, 6.0
        %v536 = vmin.f32 %v504, 6.0
        %v537 = vmin.f32 %v505, 6.0
        %v538 = vmin.f32 %v506, 6.0
        %v539 = vmin.f32 %v507, 6.0
        %v540 = vmin.f32 %v508, 6.0
        %v541 = vmin.f32 %v509, 6.0
        %v542 = vmin.f32 %v510, 6.0
        %v543 = vmin.f32 %v511, 6.0
        %v544 = vmin.f32 %v512, 6.0
        %v545 = vmin.f32 %v513, 6.0
        %v546 = vmin.f32 %v514, 6.0
        %v547 = vmin.f32 %v515, 6.0
        %v548 = vmin.f32 %v516, 6.0
        %v549 = vmin.f32 %v517, 6.0
        %v550 = vmin.f32 %v518, 6.0
        %v551 = vmin.f32 %v519, 6.0
        %v552 = vmin.f32 %v520, 6.0
        %v553 = vmin.f32 %v521, 6.0
        %v554 = vmin.f32 %v522, 6.0
        %v555 = vmin.f32 %v523, 6.0
        %v556 = vmin.f32 %v524, 6.0
        %v557 = vmin.f32 %v525, 6.0
        %v558 = vpack.c.bf16 %v526, %v526
        %v559 = vpack.c.bf16 %v527, %v527
        %v560 = vpack.c.bf16 %v528, %v528
        %v561 = vpack.c.bf16 %v529, %v529
        %v562 = vpack.c.bf16 %v530, %v530
        %v563 = vpack.c.bf16 %v531, %v531
        %v564 = vpack.c.bf16 %v532, %v532
        %v565 = vpack.c.bf16 %v533, %v533
        %v566 = vpack.c.bf16 %v534, %v534
        %v567 = vpack.c.bf16 %v535, %v535
        %v568 = vpack.c.bf16 %v536, %v536
        %v569 = vpack.c.bf16 %v537, %v537
        %v570 = vpack.c.bf16 %v538, %v538
        %v571 = vpack.c.bf16 %v539, %v539
        %v572 = vpack.c.bf16 %v540, %v540
        %v573 = vpack.c.bf16 %v541, %v541
        %v574 = vpack.c.bf16 %v542, %v542
        %v575 = vpack.c.bf16 %v543, %v543
        %v576 = vpack.c.bf16 %v544, %v544
        %v577 = vpack.c.bf16 %v545, %v545
        %v578 = vpack.c.bf16 %v546, %v546
        %v579 = vpack.c.bf16 %v547, %v547
        %v580 = vpack.c.bf16 %v548, %v548
        %v581 = vpack.c.bf16 %v549, %v549
        %v582 = vpack.c.bf16 %v550, %v550
        %v583 = vpack.c.bf16 %v551, %v551
        %v584 = vpack.c.bf16 %v552, %v552
        %v585 = vpack.c.bf16 %v553, %v553
        %v586 = vpack.c.bf16 %v554, %v554
        %v587 = vpack.c.bf16 %v555, %v555
        %v588 = vpack.c.bf16 %v556, %v556
        %v589 = vpack.c.bf16 %v557, %v557
        %590 = vst [vmem:[%s202] sm:$0xf] %v558
        %591 = vst [vmem:[%s202 + $0x4] sm:$0xf] %v559
        %592 = vst [vmem:[%s202 + $0x8] sm:$0xf] %v560
        %593 = vst [vmem:[%s202 + $0xc] sm:$0xf] %v561
        %594 = vst [vmem:[%s202 + $0x10] sm:$0xf] %v562
        %595 = vst [vmem:[%s202 + $0x14] sm:$0xf] %v563
        %596 = vst [vmem:[%s202 + $0x18] sm:$0xf] %v564
        %597 = vst [vmem:[%s202 + $0x1c] sm:$0xf] %v565
        %598 = vst [vmem:[%s202 + $0x20] sm:$0xf] %v566
        %599 = vst [vmem:[%s202 + $0x24] sm:$0xf] %v567
        %600 = vst [vmem:[%s202 + $0x28] sm:$0xf] %v568
        %601 = vst [vmem:[%s202 + $0x2c] sm:$0xf] %v569
        %602 = vst [vmem:[%s202 + $0x30] sm:$0xf] %v570
        %603 = vst [vmem:[%s202 + $0x34] sm:$0xf] %v571
        %604 = vst [vmem:[%s202 + $0x38] sm:$0xf] %v572
        %605 = vst [vmem:[%s202 + $0x3c] sm:$0xf] %v573
        %606 = vst [vmem:[%s202 + $0x40] sm:$0xf] %v574
        %607 = vst [vmem:[%s202 + $0x44] sm:$0xf] %v575
        %608 = vst [vmem:[%s202 + $0x48] sm:$0xf] %v576
        %609 = vst [vmem:[%s202 + $0x4c] sm:$0xf] %v577
        %610 = vst [vmem:[%s202 + $0x50] sm:$0xf] %v578
        %611 = vst [vmem:[%s202 + $0x54] sm:$0xf] %v579
        %612 = vst [vmem:[%s202 + $0x58] sm:$0xf] %v580
        %613 = vst [vmem:[%s202 + $0x5c] sm:$0xf] %v581
        %614 = vst [vmem:[%s202 + $0x60] sm:$0xf] %v582
        %615 = vst [vmem:[%s202 + $0x64] sm:$0xf] %v583
        %616 = vst [vmem:[%s202 + $0x68] sm:$0xf] %v584
        %617 = vst [vmem:[%s202 + $0x6c] sm:$0xf] %v585
        %618 = vst [vmem:[%s202 + $0x70] sm:$0xf] %v586
        %619 = vst [vmem:[%s202 + $0x74] sm:$0xf] %v587
        %620 = vst [vmem:[%s202 + $0x78] sm:$0xf] %v588
        %621 = vst [vmem:[%s202 + $0x7c] sm:$0xf] %v589
        %s622 = sand.u32 %s117, 1
        %s623 = scalar_lea.sflag [#allocation3], %s622
        %s624 = sand.u32 %s117, 1
        %s625 = smul.addr %s624, 128
        %s626 = scalar_lea.vmem [#allocation2], %s625
        // Predicated region
        $region33: #{tpu_custom_call.1} parent=31 // pred_check
          %p627 = pneg %p127
        $region34: #{tpu_custom_call.1} parent=31 // pred_check_branch
          %629 = sbr.rel (%p627) target = $region36
        $region35: #{tpu_custom_call.1} parent=31 // pred_region
          %s630 = smul.u32 32, %s21
          %632 = vsyncadd %s623, 0
          %s633 = sadd.s32 %s22, %s630
          %s634 = smul.addr %s633, 4
          %s635 = scalar_lea.hbm %s3, %s634
          %s636 = sshll.u32 %s626, 4
          %s637 = int_to_ptr.vmem [resolvable:$true] %s636
          %s638 = sshll.u32 %s635, 4
          %s639 = int_to_ptr.hbm [resolvable:$true] %s638
          %644 = dma.vmem_to_hbm [thread:$0]  %s637, 2048, %s639, %s623, 64, 64, 4
        $region36: #{tpu_custom_call.1} parent=31 // pred_fallthru
          _
      $region32: #{tpu_custom_call.1} parent=5 // pred_fallthru
        _
      %p645 = scmp.le.s32.totalorder 2, %s12
      // Predicated region
      $region37: #{tpu_custom_call.1} parent=5 // pred_check
        %p646 = pneg %p645
      $region38: #{tpu_custom_call.1} parent=5 // pred_check_branch
        %648 = sbr.rel (%p646) target = $region40
      $region39: #{tpu_custom_call.1} parent=5 // pred_region
        %s649 = ssub.s32 %s12, 2
        // Predicated region
        $region41: #{tpu_custom_call.1} parent=39 // pred_check
          %p650 = pneg %p133
        $region42: #{tpu_custom_call.1} parent=39 // pred_check_branch
          %652 = sbr.rel (%p650) target = $region44
        $region43: #{tpu_custom_call.1} parent=39 // pred_region
          %s653 = sand.u32 %s118, 1
          %s654 = scalar_lea.sflag [#allocation3], %s653
          %s655 = sand.u32 %s118, 1
          %s656 = smul.addr %s655, 128
          %s657 = scalar_lea.vmem [#allocation2], %s656
          %659 = dma.done %s654, 2048
        $region44: #{tpu_custom_call.1} parent=39 // pred_fallthru
          _
      $region40: #{tpu_custom_call.1} parent=5 // pred_fallthru
        _
    $region6: #{tpu_custom_call.1} parent=1 // loop_footer
      %s16 = sadd.s32 1, %s12
    $region7: #{tpu_custom_call.1} parent=1 // loop_footer_branch
      %11 = sbr.rel target = $region3
    $region8: #{tpu_custom_call.1} parent=1 // loop_exit
      _
    %660 = vsyncpa [#allocation3], 1
    %s661 = scalar_lea.sflag [#allocation3], 1
    %662 = vsyncpa %s661, 1

</llo_original>
